<compile_context>
chip_gen: v6e
topology: v6e:2x2x1
jax: 0.10.0
libtpu: 0.0.40
codegen_flags: <defaults>
</compile_context>

<pallas_src>
import jax
import jax.numpy as jnp
from jax import lax
from jax.experimental import pallas as pl
from jax.experimental.pallas import tpu as pltpu

_LANE = 512          # lane-dense slab width (multiple of 128)
_TILE_ROWS = 1024    # 1024 * 512 * 4B = 2 MiB per f32 block


def _u32_as_i32(c: int) -> int:
    """Reinterpret a 32-bit unsigned constant as a Python int32 value."""
    return c - (1 << 32) if c >= (1 << 31) else c


_GOLDEN = _u32_as_i32(0x9E3779B9)
_MUL1 = _u32_as_i32(0x85EBCA6B)
_MUL2 = _u32_as_i32(0xC2B2AE35)


def _srl(x, n):
    """Logical right shift of an int32 array by a constant."""
    return lax.shift_right_logical(x, jnp.full_like(x, n))


def _std_normal_from_uniform(u):
    """Inverse normal CDF (Acklam's rational approximation), f32, u in (0,1)."""
    a0, a1, a2, a3, a4, a5 = (-3.969683028665376e+01, 2.209460984245205e+02,
                              -2.759285104469687e+02, 1.383577518672690e+02,
                              -3.066479806614716e+01, 2.506628277459239e+00)
    b0, b1, b2, b3, b4 = (-5.447609879822406e+01, 1.615858368580409e+02,
                          -1.556989798598866e+02, 6.680131188771972e+01,
                          -1.328068155288572e+01)
    c0, c1, c2, c3, c4, c5 = (-7.784894002430293e-03, -3.223964580411365e-01,
                              -2.400758277161838e+00, -2.549732539343734e+00,
                              4.374664141464968e+00, 2.938163982698783e+00)
    d0, d1, d2, d3 = (7.784695709041462e-03, 3.224671290700398e-01,
                      2.445134137142996e+00, 3.754408661907416e+00)
    p_low = 0.02425

    # Central region.
    q = u - 0.5
    r = q * q
    num_c = (((((a0 * r + a1) * r + a2) * r + a3) * r + a4) * r + a5) * q
    den_c = ((((b0 * r + b1) * r + b2) * r + b3) * r + b4) * r + 1.0
    x_central = num_c / den_c

    # Tails (handled symmetrically via t = distance into the nearer tail).
    t = jnp.minimum(u, 1.0 - u)           # >= 0.5/2^23, so log is safe
    s = jnp.sqrt(-2.0 * jnp.log(t))
    num_t = ((((c0 * s + c1) * s + c2) * s + c3) * s + c4) * s + c5
    den_t = (((d0 * s + d1) * s + d2) * s + d3) * s + 1.0
    sign = jnp.where(u < 0.5, -1.0, 1.0)
    x_tail = -sign * (num_t / den_t)

    return jnp.where(t < p_low, x_tail, x_central)


def _gaussian_noise_kernel(seed_ref, params_ref, x_ref, o_ref):
    mean = params_ref[0]
    std = params_ref[1]
    seed = seed_ref[0]

    tr, tc = x_ref.shape
    row = lax.broadcasted_iota(jnp.int32, (tr, tc), 0)
    col = lax.broadcasted_iota(jnp.int32, (tr, tc), 1)
    # Global element index: unique per element regardless of tiling / core,
    # so every tile (and each megacore half) gets a distinct noise stream.
    gidx = (pl.program_id(0) * tr + row) * tc + col

    # Counter-based PRNG: murmur3 fmix32 of (counter + seed * golden-ratio).
    h = gidx + seed * _GOLDEN
    h = (_srl(h, 16) ^ h) * _MUL1
    h = (_srl(h, 13) ^ h) * _MUL2
    h = _srl(h, 16) ^ h

    mant = jnp.bitwise_and(h, 0x7FFFFF)                      # 23 bits, >= 0
    u = (mant.astype(jnp.float32) + 0.5) * (1.0 / 8388608.0)  # uniform (0, 1)

    z = _std_normal_from_uniform(u)                          # ~N(0, 1)
    x = x_ref[...].astype(jnp.float32)
    o_ref[...] = (x + z * std + mean).astype(o_ref.dtype)


def gaussian_noise(img: jax.Array, seed: int = 0, mean: float = 0.0,
                   std: float = 1.0) -> jax.Array:
    """Pallas equivalent of GaussianNoise.forward(img)."""
    orig_shape = img.shape
    orig_dtype = img.dtype

    flat = img.reshape(-1)
    n = flat.shape[0]

    chunk = 8 * _LANE                        # keep rows a multiple of 8
    padded = pl.cdiv(n, chunk) * chunk
    if padded != n:                          # only pad when truly needed
        flat = jnp.pad(flat, (0, padded - n))
    rows = padded // _LANE
    x2d = flat.reshape(rows, _LANE)          # keep original dtype end-to-end

    block_rows = min(_TILE_ROWS, rows)
    grid = pl.cdiv(rows, block_rows)

    seed_arr = jnp.asarray([seed], dtype=jnp.int32)
    params = jnp.asarray([mean, std], dtype=jnp.float32)

    out2d = pl.pallas_call(
        _gaussian_noise_kernel,
        out_shape=jax.ShapeDtypeStruct((rows, _LANE), orig_dtype),
        grid_spec=pl.GridSpec(
            grid=(grid,),
            in_specs=[
                pl.BlockSpec(memory_space=pltpu.MemorySpace.SMEM),   # seed
                pl.BlockSpec(memory_space=pltpu.MemorySpace.SMEM),   # mean,std
                pl.BlockSpec((block_rows, _LANE), lambda i: (i, 0)),
            ],
            out_specs=pl.BlockSpec((block_rows, _LANE), lambda i: (i, 0)),
        ),
        compiler_params=pltpu.CompilerParams(
            dimension_semantics=("parallel",)),
    )(seed_arr, params, x2d)

    out = out2d.reshape(-1)
    if padded != n:
        out = out[:n]
    return out.reshape(orig_shape)


if __name__ == "__main__":
    key = jax.random.PRNGKey(0)
    # NCHW, matching the PyTorch convention for image tensors.
    x = jax.random.normal(key, (2, 4, 16, 16), dtype=jnp.float32)

    y = gaussian_noise(x, seed=0, mean=0.0, std=1.0)
    y = jax.block_until_ready(y)

    assert y.shape == x.shape and y.dtype == x.dtype
    assert bool(jnp.all(jnp.isfinite(y)))

    noise = y - x
    assert float(jnp.max(jnp.abs(noise))) > 0.0          # noise was added
    nm = float(jnp.mean(noise))
    ns = float(jnp.std(noise))
    assert abs(nm) < 0.25, f"noise mean off: {nm}"
    assert 0.75 < ns < 1.25, f"noise std off: {ns}"

    print("KERNEL_OK")
</pallas_src>

<mosaic_0001>
module attributes {stable_mosaic.version = 11 : i64} {
  func.func @_gaussian_noise_kernel(%arg0: i32, %arg1: memref<1xi32, #tpu.memory_space<smem>>, %arg2: memref<2xf32, #tpu.memory_space<smem>>, %arg3: memref<8x512xf32, #tpu.memory_space<vmem>>, %arg4: memref<8x512xf32, #tpu.memory_space<vmem>>) attributes {dimension_semantics = [#tpu.dimension_semantics<parallel>], iteration_bounds = array<i64: 1>, scalar_prefetch = 0 : i64, scratch_operands = 0 : i64, tpu.core_type = #tpu.core_type<tc>, window_params = [{transform_indices = @transform_0, window_bounds = array<i64: 1>}, {transform_indices = @transform_1, window_bounds = array<i64: 2>}, {transform_indices = @transform_2, window_bounds = array<i64: 8, 512>}, {transform_indices = @transform_3, window_bounds = array<i64: 8, 512>}]} {
    %c0 = arith.constant 0 : index
    %0 = memref.load %arg2[%c0] : memref<2xf32, #tpu.memory_space<smem>>
    %c1 = arith.constant 1 : index
    %1 = memref.load %arg2[%c1] : memref<2xf32, #tpu.memory_space<smem>>
    %c0_0 = arith.constant 0 : index
    %2 = memref.load %arg1[%c0_0] : memref<1xi32, #tpu.memory_space<smem>>
    %3 = tpu.iota {dimensions = array<i32: 0>} : vector<8x512xi32>
    %4 = tpu.iota {dimensions = array<i32: 1>} : vector<8x512xi32>
    %c8_i32 = arith.constant 8 : i32
    %5 = arith.muli %arg0, %c8_i32 : i32
    %6 = vector.broadcast %5 : i32 to vector<8x512xi32>
    %7 = arith.addi %6, %3 : vector<8x512xi32>
    %c512_i32 = arith.constant 512 : i32
    %8 = vector.broadcast %c512_i32 : i32 to vector<8x512xi32>
    %9 = arith.muli %7, %8 : vector<8x512xi32>
    %10 = arith.addi %9, %4 : vector<8x512xi32>
    %c-1640531527_i32 = arith.constant -1640531527 : i32
    %11 = arith.muli %2, %c-1640531527_i32 : i32
    %12 = vector.broadcast %11 : i32 to vector<8x512xi32>
    %13 = arith.addi %10, %12 : vector<8x512xi32>
    %c16_i32 = arith.constant 16 : i32
    %14 = vector.broadcast %c16_i32 : i32 to vector<8x512xi32>
    %15 = arith.shrui %13, %14 : vector<8x512xi32>
    %16 = arith.xori %15, %13 : vector<8x512xi32>
    %c-2048144789_i32 = arith.constant -2048144789 : i32
    %17 = vector.broadcast %c-2048144789_i32 : i32 to vector<8x512xi32>
    %18 = arith.muli %16, %17 : vector<8x512xi32>
    %c13_i32 = arith.constant 13 : i32
    %19 = vector.broadcast %c13_i32 : i32 to vector<8x512xi32>
    %20 = arith.shrui %18, %19 : vector<8x512xi32>
    %21 = arith.xori %20, %18 : vector<8x512xi32>
    %c-1028477387_i32 = arith.constant -1028477387 : i32
    %22 = vector.broadcast %c-1028477387_i32 : i32 to vector<8x512xi32>
    %23 = arith.muli %21, %22 : vector<8x512xi32>
    %c16_i32_1 = arith.constant 16 : i32
    %24 = vector.broadcast %c16_i32_1 : i32 to vector<8x512xi32>
    %25 = arith.shrui %23, %24 : vector<8x512xi32>
    %26 = arith.xori %25, %23 : vector<8x512xi32>
    %c8388607_i32 = arith.constant 8388607 : i32
    %27 = vector.broadcast %c8388607_i32 : i32 to vector<8x512xi32>
    %28 = arith.andi %26, %27 : vector<8x512xi32>
    %29 = arith.sitofp %28 : vector<8x512xi32> to vector<8x512xf32>
    %cst = arith.constant 5.000000e-01 : f32
    %30 = vector.broadcast %cst : f32 to vector<8x512xf32>
    %31 = arith.addf %29, %30 : vector<8x512xf32>
    %cst_2 = arith.constant 1.1920929E-7 : f32
    %32 = vector.broadcast %cst_2 : f32 to vector<8x512xf32>
    %33 = arith.mulf %31, %32 : vector<8x512xf32>
    %cst_3 = arith.constant 5.000000e-01 : f32
    %34 = vector.broadcast %cst_3 : f32 to vector<8x512xf32>
    %35 = arith.subf %33, %34 : vector<8x512xf32>
    %36 = arith.mulf %35, %35 : vector<8x512xf32>
    %cst_4 = arith.constant -39.6968307 : f32
    %37 = vector.broadcast %cst_4 : f32 to vector<8x512xf32>
    %38 = arith.mulf %37, %36 : vector<8x512xf32>
    %cst_5 = arith.constant 220.946106 : f32
    %39 = vector.broadcast %cst_5 : f32 to vector<8x512xf32>
    %40 = arith.addf %38, %39 : vector<8x512xf32>
    %41 = arith.mulf %40, %36 : vector<8x512xf32>
    %cst_6 = arith.constant -275.928497 : f32
    %42 = vector.broadcast %cst_6 : f32 to vector<8x512xf32>
    %43 = arith.addf %41, %42 : vector<8x512xf32>
    %44 = arith.mulf %43, %36 : vector<8x512xf32>
    %cst_7 = arith.constant 138.357758 : f32
    %45 = vector.broadcast %cst_7 : f32 to vector<8x512xf32>
    %46 = arith.addf %44, %45 : vector<8x512xf32>
    %47 = arith.mulf %46, %36 : vector<8x512xf32>
    %cst_8 = arith.constant -30.6647987 : f32
    %48 = vector.broadcast %cst_8 : f32 to vector<8x512xf32>
    %49 = arith.addf %47, %48 : vector<8x512xf32>
    %50 = arith.mulf %49, %36 : vector<8x512xf32>
    %cst_9 = arith.constant 2.50662827 : f32
    %51 = vector.broadcast %cst_9 : f32 to vector<8x512xf32>
    %52 = arith.addf %50, %51 : vector<8x512xf32>
    %53 = arith.mulf %52, %35 : vector<8x512xf32>
    %cst_10 = arith.constant -54.4760971 : f32
    %54 = vector.broadcast %cst_10 : f32 to vector<8x512xf32>
    %55 = arith.mulf %54, %36 : vector<8x512xf32>
    %cst_11 = arith.constant 161.585831 : f32
    %56 = vector.broadcast %cst_11 : f32 to vector<8x512xf32>
    %57 = arith.addf %55, %56 : vector<8x512xf32>
    %58 = arith.mulf %57, %36 : vector<8x512xf32>
    %cst_12 = arith.constant -155.698975 : f32
    %59 = vector.broadcast %cst_12 : f32 to vector<8x512xf32>
    %60 = arith.addf %58, %59 : vector<8x512xf32>
    %61 = arith.mulf %60, %36 : vector<8x512xf32>
    %cst_13 = arith.constant 66.8013153 : f32
    %62 = vector.broadcast %cst_13 : f32 to vector<8x512xf32>
    %63 = arith.addf %61, %62 : vector<8x512xf32>
    %64 = arith.mulf %63, %36 : vector<8x512xf32>
    %cst_14 = arith.constant -13.2806816 : f32
    %65 = vector.broadcast %cst_14 : f32 to vector<8x512xf32>
    %66 = arith.addf %64, %65 : vector<8x512xf32>
    %67 = arith.mulf %66, %36 : vector<8x512xf32>
    %cst_15 = arith.constant 1.000000e+00 : f32
    %68 = vector.broadcast %cst_15 : f32 to vector<8x512xf32>
    %69 = arith.addf %67, %68 : vector<8x512xf32>
    %70 = arith.divf %53, %69 : vector<8x512xf32>
    %cst_16 = arith.constant 1.000000e+00 : f32
    %71 = vector.broadcast %cst_16 : f32 to vector<8x512xf32>
    %72 = arith.subf %71, %33 : vector<8x512xf32>
    %73 = arith.minimumf %33, %72 : vector<8x512xf32>
    %74 = math.log %73 : vector<8x512xf32>
    %cst_17 = arith.constant -2.000000e+00 : f32
    %75 = vector.broadcast %cst_17 : f32 to vector<8x512xf32>
    %76 = arith.mulf %75, %74 : vector<8x512xf32>
    %77 = math.sqrt %76 : vector<8x512xf32>
    %cst_18 = arith.constant -0.0077848942 : f32
    %78 = vector.broadcast %cst_18 : f32 to vector<8x512xf32>
    %79 = arith.mulf %78, %77 : vector<8x512xf32>
    %cst_19 = arith.constant -0.322396457 : f32
    %80 = vector.broadcast %cst_19 : f32 to vector<8x512xf32>
    %81 = arith.addf %79, %80 : vector<8x512xf32>
    %82 = arith.mulf %81, %77 : vector<8x512xf32>
    %cst_20 = arith.constant -2.40075827 : f32
    %83 = vector.broadcast %cst_20 : f32 to vector<8x512xf32>
    %84 = arith.addf %82, %83 : vector<8x512xf32>
    %85 = arith.mulf %84, %77 : vector<8x512xf32>
    %cst_21 = arith.constant -2.54973245 : f32
    %86 = vector.broadcast %cst_21 : f32 to vector<8x512xf32>
    %87 = arith.addf %85, %86 : vector<8x512xf32>
    %88 = arith.mulf %87, %77 : vector<8x512xf32>
    %cst_22 = arith.constant 4.37466431 : f32
    %89 = vector.broadcast %cst_22 : f32 to vector<8x512xf32>
    %90 = arith.addf %88, %89 : vector<8x512xf32>
    %91 = arith.mulf %90, %77 : vector<8x512xf32>
    %cst_23 = arith.constant 2.938164 : f32
    %92 = vector.broadcast %cst_23 : f32 to vector<8x512xf32>
    %93 = arith.addf %91, %92 : vector<8x512xf32>
    %cst_24 = arith.constant 0.00778469583 : f32
    %94 = vector.broadcast %cst_24 : f32 to vector<8x512xf32>
    %95 = arith.mulf %94, %77 : vector<8x512xf32>
    %cst_25 = arith.constant 0.322467119 : f32
    %96 = vector.broadcast %cst_25 : f32 to vector<8x512xf32>
    %97 = arith.addf %95, %96 : vector<8x512xf32>
    %98 = arith.mulf %97, %77 : vector<8x512xf32>
    %cst_26 = arith.constant 2.44513416 : f32
    %99 = vector.broadcast %cst_26 : f32 to vector<8x512xf32>
    %100 = arith.addf %98, %99 : vector<8x512xf32>
    %101 = arith.mulf %100, %77 : vector<8x512xf32>
    %cst_27 = arith.constant 3.7544086 : f32
    %102 = vector.broadcast %cst_27 : f32 to vector<8x512xf32>
    %103 = arith.addf %101, %102 : vector<8x512xf32>
    %104 = arith.mulf %103, %77 : vector<8x512xf32>
    %cst_28 = arith.constant 1.000000e+00 : f32
    %105 = vector.broadcast %cst_28 : f32 to vector<8x512xf32>
    %106 = arith.addf %104, %105 : vector<8x512xf32>
    %cst_29 = arith.constant 5.000000e-01 : f32
    %107 = vector.broadcast %cst_29 : f32 to vector<8x512xf32>
    %108 = arith.cmpf olt, %33, %107 : vector<8x512xf32>
    %cst_30 = arith.constant -1.000000e+00 : f32
    %cst_31 = arith.constant 1.000000e+00 : f32
    %109 = vector.broadcast %cst_30 : f32 to vector<8x512xf32>
    %110 = vector.broadcast %cst_31 : f32 to vector<8x512xf32>
    %111 = arith.select %108, %109, %110 : vector<8x512xi1>, vector<8x512xf32>
    %cst_32 = arith.constant 0.000000e+00 : f32
    %112 = vector.broadcast %cst_32 : f32 to vector<8x512xf32>
    %113 = arith.subf %112, %111 : vector<8x512xf32>
    %114 = arith.divf %93, %106 : vector<8x512xf32>
    %115 = arith.mulf %113, %114 : vector<8x512xf32>
    %cst_33 = arith.constant 2.425000e-02 : f32
    %116 = vector.broadcast %cst_33 : f32 to vector<8x512xf32>
    %117 = arith.cmpf olt, %73, %116 : vector<8x512xf32>
    %118 = arith.select %117, %115, %70 : vector<8x512xi1>, vector<8x512xf32>
    %c0_34 = arith.constant 0 : index
    %c0_35 = arith.constant 0 : index
    %119 = vector.load %arg3[%c0_34, %c0_35] : memref<8x512xf32, #tpu.memory_space<vmem>>, vector<8x512xf32>
    %120 = vector.broadcast %1 : f32 to vector<8x512xf32>
    %121 = arith.mulf %118, %120 : vector<8x512xf32>
    %122 = arith.addf %119, %121 : vector<8x512xf32>
    %123 = vector.broadcast %0 : f32 to vector<8x512xf32>
    %124 = arith.addf %122, %123 : vector<8x512xf32>
    %c0_36 = arith.constant 0 : index
    %c0_37 = arith.constant 0 : index
    %125 = vector.load %arg4[%c0_36, %c0_37] : memref<8x512xf32, #tpu.memory_space<vmem>>, vector<8x512xf32>
    tpu.vector_store %arg4[%c0_36, %c0_37], %124 {strides = array<i32>} : memref<8x512xf32, #tpu.memory_space<vmem>>, vector<8x512xf32>,
    return
  }
  func.func @transform_0(%arg0: i32) -> i32 {
    %c0_i32 = arith.constant 0 : i32
    %c0_i32_0 = arith.constant 0 : i32
    return %c0_i32 : i32
  }
  func.func @transform_1(%arg0: i32) -> i32 {
    %c0_i32 = arith.constant 0 : i32
    %c0_i32_0 = arith.constant 0 : i32
    return %c0_i32 : i32
  }
  func.func @transform_2(%arg0: i32) -> (i32, i32) {
    %c0_i32 = arith.constant 0 : i32
    %c0_i32_0 = arith.constant 0 : i32
    return %arg0, %c0_i32 : i32, i32
  }
  func.func @transform_3(%arg0: i32) -> (i32, i32) {
    %c0_i32 = arith.constant 0 : i32
    %c0_i32_0 = arith.constant 0 : i32
    return %arg0, %c0_i32 : i32, i32
  }
}

</mosaic_0001>

<llo_original>
// kernel: tpu_custom_call.1
$region0: #{tpu_custom_call.1}
  #allocation0 [shape = 'u32[]', space=smem, size = 0x4, offset = 0x4, fixed_abs, tag = 'smem constant byte address 0x4 - core index']
  #allocation1 [shape = 'u32[144,128]{1,0:T(1,128)}', space=vmem, size = 0x12000, scoped, tag = 'internal scratch']
  #allocation2 [shape = 's32[1]{0:T(128)S(6)}', space=smem, size = 0x200, scoped, tag = 'scoped memory for tpu_custom_call.1']
  %s0 = inlined_call_operand.<no memory space> [shape: s32[1], index: 0, kind: input, shape index: {}]
  %s1 = inlined_call_operand.vmem [shape: f32[2], index: 1, kind: input, shape index: {}]
  %s2 = inlined_call_operand.hbm [shape: f32[8,512], index: 2, kind: input, shape index: {}]
  %s3 = inlined_call_operand.hbm [shape: f32[8,512], index: 3, kind: output, shape index: {}]
  %s4 = sld [smem:[#allocation0]]
  $region30: #{tpu_custom_call.1} parent=0
    _
  %s6 = ssub.s32 1, %s4
  %s7 = scalar_select 0, %s6, %s4
  %8 = sst [smem:[#allocation2]] %s0
  $region1: #{tpu_custom_call.1} parent=0
    #allocation3 [shape = 'u8[512]{0}', space=smem, size = 0x200, scoped, tag = 'input window, operand 1, single buffered']
    #allocation4 [shape = 's32[1]{0}', space=sflag, size = 0x4, scoped, tag = 'scoped memory for tpu_custom_call.1']
    #allocation5 [shape = 's32[1]{0}', space=sflag, size = 0x4, scoped, tag = 'scoped memory for tpu_custom_call.1']
    #allocation6 [shape = 's32[1]{0}', space=sflag, size = 0x4, scoped, tag = 'scoped memory for tpu_custom_call.1']
    #allocation7 [shape = 'u8[16384]{0}', space=vmem, size = 0x4000, scoped, tag = 'input window, operand 2, single buffered']
    #allocation8 [shape = 'u8[16384]{0}', space=vmem, size = 0x4000, scoped, tag = 'output window, operand 0, single buffered']
    %9 = vsyncpa [#allocation6], 0
    %10 = vsyncpa [#allocation4], 0
    %11 = vsyncpa [#allocation5], 0
    // Predicated region
    $region2: #{tpu_custom_call.1} parent=1 // pred_check
      _
    $region3: #{tpu_custom_call.1} parent=1 // pred_check_branch
      %13 = sbr.rel (0) target = $region5
    $region4: #{tpu_custom_call.1} parent=1 // pred_region
      _
    $region5: #{tpu_custom_call.1} parent=1 // pred_fallthru
      _
    // Predicated region
    $region6: #{tpu_custom_call.1} parent=1 // pred_check
      _
    $region7: #{tpu_custom_call.1} parent=1 // pred_check_branch
      %15 = sbr.rel (0) target = $region9
    $region8: #{tpu_custom_call.1} parent=1 // pred_region
      %s17 = ssub.s32 16, 16
      %18 = vsyncadd [#allocation6], %s17
      %s20 = sshll.u32 %s1, 4
      %s21 = int_to_ptr.vmem [resolvable:$true] %s20
      %23 = dma.vmem_to_smem %s21, 16, [#allocation3], [#allocation6]
    $region9: #{tpu_custom_call.1} parent=1 // pred_fallthru
      _
    // Predicated region
    $region10: #{tpu_custom_call.1} parent=1 // pred_check
      _
    $region11: #{tpu_custom_call.1} parent=1 // pred_check_branch
      %25 = sbr.rel (0) target = $region13
    $region12: #{tpu_custom_call.1} parent=1 // pred_region
      %s27 = ssub.s32 512, 512
      %28 = vsyncadd [#allocation4], %s27
      %s30 = sshll.u32 [#allocation7], 4
      %s31 = int_to_ptr.vmem [resolvable:$true] %s30
      %33 = dma.hbm_to_vmem [thread:$0]  %s2, 512, %s31, [#allocation4]
    $region13: #{tpu_custom_call.1} parent=1 // pred_fallthru
      _
    // Predicated region
    $region14: #{tpu_custom_call.1} parent=1 // pred_check
      _
    $region15: #{tpu_custom_call.1} parent=1 // pred_check_branch
      %35 = sbr.rel (0) target = $region17
    $region16: #{tpu_custom_call.1} parent=1 // pred_region
      %36 = dma.done [#allocation6], 16
    $region17: #{tpu_custom_call.1} parent=1 // pred_fallthru
      _
    // Predicated region
    $region18: #{tpu_custom_call.1} parent=1 // pred_check
      _
    $region19: #{tpu_custom_call.1} parent=1 // pred_check_branch
      %38 = sbr.rel (0) target = $region21
    $region20: #{tpu_custom_call.1} parent=1 // pred_region
      %39 = dma.done [#allocation4], 512
    $region21: #{tpu_custom_call.1} parent=1 // pred_fallthru
      _
    %40 = sfence
    %s41 = sld [smem:[#allocation3]]
    %s42 = sld [smem:[#allocation3 + $0x1]]
    %s43 = sld [smem:[#allocation2]]
    %v44 = vlaneseq
    %v45 = vshrl.u32 %v44, 7
    %v46 = vlaneseq
    %v47 = vand.u32 %v46, 127
    %v48 = vadd.s32 %v47, 128
    %v49 = vadd.s32 %v47, 256
    %v50 = vadd.s32 %v47, 384
    %s51 = smul.u32 0, 8
    %v52 = vstv %s51
    %v53 = vadd.s32 %v52, %v45
    %v54 = vmul.u32 %v53, 512
    %v55 = vadd.s32 %v54, %v47
    %v56 = vadd.s32 %v54, %v48
    %v57 = vadd.s32 %v54, %v49
    %v58 = vadd.s32 %v54, %v50
    %s59 = smul.u32 %s43, 2654435769
    %v60 = vstv %s59
    %v61 = vadd.s32 %v55, %v60
    %v62 = vadd.s32 %v56, %v60
    %v63 = vadd.s32 %v57, %v60
    %v64 = vadd.s32 %v58, %v60
    %v65 = vshrl.u32 %v61, 16
    %v66 = vshrl.u32 %v62, 16
    %v67 = vshrl.u32 %v63, 16
    %v68 = vshrl.u32 %v64, 16
    %v69 = vxor.u32 %v65, %v61
    %v70 = vxor.u32 %v66, %v62
    %v71 = vxor.u32 %v67, %v63
    %v72 = vxor.u32 %v68, %v64
    %v73 = vmul.u32 %v69, 2246822507
    %v74 = vmul.u32 %v70, 2246822507
    %v75 = vmul.u32 %v71, 2246822507
    %v76 = vmul.u32 %v72, 2246822507
    %v77 = vshrl.u32 %v73, 13
    %v78 = vshrl.u32 %v74, 13
    %v79 = vshrl.u32 %v75, 13
    %v80 = vshrl.u32 %v76, 13
    %v81 = vxor.u32 %v77, %v73
    %v82 = vxor.u32 %v78, %v74
    %v83 = vxor.u32 %v79, %v75
    %v84 = vxor.u32 %v80, %v76
    %v85 = vmul.u32 %v81, 3266489909
    %v86 = vmul.u32 %v82, 3266489909
    %v87 = vmul.u32 %v83, 3266489909
    %v88 = vmul.u32 %v84, 3266489909
    %v89 = vshrl.u32 %v85, 16
    %v90 = vshrl.u32 %v86, 16
    %v91 = vshrl.u32 %v87, 16
    %v92 = vshrl.u32 %v88, 16
    %v93 = vxor.u32 %v89, %v85
    %v94 = vxor.u32 %v90, %v86
    %v95 = vxor.u32 %v91, %v87
    %v96 = vxor.u32 %v92, %v88
    %v97 = vand.u32 %v93, 8388607
    %v98 = vand.u32 %v94, 8388607
    %v99 = vand.u32 %v95, 8388607
    %v100 = vand.u32 %v96, 8388607
    %v101 = vcvt.s32.f32 %v97
    %v102 = vcvt.s32.f32 %v98
    %v103 = vcvt.s32.f32 %v99
    %v104 = vcvt.s32.f32 %v100
    %v105 = vadd.f32 %v101, 0.5
    %v106 = vadd.f32 %v102, 0.5
    %v107 = vadd.f32 %v103, 0.5
    %v108 = vadd.f32 %v104, 0.5
    %v109 = vmul.f32 %v105, 1.1920929e-07
    %v110 = vmul.f32 %v106, 1.1920929e-07
    %v111 = vmul.f32 %v107, 1.1920929e-07
    %v112 = vmul.f32 %v108, 1.1920929e-07
    %v113 = vsub.f32 %v109, 0.5
    %v114 = vsub.f32 %v110, 0.5
    %v115 = vsub.f32 %v111, 0.5
    %v116 = vsub.f32 %v112, 0.5
    %v117 = vmul.f32 %v113, %v113
    %v118 = vmul.f32 %v114, %v114
    %v119 = vmul.f32 %v115, %v115
    %v120 = vmul.f32 %v116, %v116
    %v121 = vmul.f32 %v117, -39.69683
    %v122 = vmul.f32 %v118, -39.69683
    %v123 = vmul.f32 %v119, -39.69683
    %v124 = vmul.f32 %v120, -39.69683
    %v125 = vadd.f32 %v121, 220.9461
    %v126 = vadd.f32 %v122, 220.9461
    %v127 = vadd.f32 %v123, 220.9461
    %v128 = vadd.f32 %v124, 220.9461
    %v129 = vmul.f32 %v125, %v117
    %v130 = vmul.f32 %v126, %v118
    %v131 = vmul.f32 %v127, %v119
    %v132 = vmul.f32 %v128, %v120
    %v133 = vadd.f32 %v129, -275.9285
    %v134 = vadd.f32 %v130, -275.9285
    %v135 = vadd.f32 %v131, -275.9285
    %v136 = vadd.f32 %v132, -275.9285
    %v137 = vmul.f32 %v133, %v117
    %v138 = vmul.f32 %v134, %v118
    %v139 = vmul.f32 %v135, %v119
    %v140 = vmul.f32 %v136, %v120
    %v141 = vadd.f32 %v137, 138.35776
    %v142 = vadd.f32 %v138, 138.35776
    %v143 = vadd.f32 %v139, 138.35776
    %v144 = vadd.f32 %v140, 138.35776
    %v145 = vmul.f32 %v141, %v117
    %v146 = vmul.f32 %v142, %v118
    %v147 = vmul.f32 %v143, %v119
    %v148 = vmul.f32 %v144, %v120
    %v149 = vadd.f32 %v145, -30.664799
    %v150 = vadd.f32 %v146, -30.664799
    %v151 = vadd.f32 %v147, -30.664799
    %v152 = vadd.f32 %v148, -30.664799
    %v153 = vmul.f32 %v149, %v117
    %v154 = vmul.f32 %v150, %v118
    %v155 = vmul.f32 %v151, %v119
    %v156 = vmul.f32 %v152, %v120
    %v157 = vadd.f32 %v153, 2.5066283
    %v158 = vadd.f32 %v154, 2.5066283
    %v159 = vadd.f32 %v155, 2.5066283
    %v160 = vadd.f32 %v156, 2.5066283
    %v161 = vmul.f32 %v157, %v113
    %v162 = vmul.f32 %v158, %v114
    %v163 = vmul.f32 %v159, %v115
    %v164 = vmul.f32 %v160, %v116
    %v165 = vmul.f32 %v117, -54.476097
    %v166 = vmul.f32 %v118, -54.476097
    %v167 = vmul.f32 %v119, -54.476097
    %v168 = vmul.f32 %v120, -54.476097
    %v169 = vadd.f32 %v165, 161.58583
    %v170 = vadd.f32 %v166, 161.58583
    %v171 = vadd.f32 %v167, 161.58583
    %v172 = vadd.f32 %v168, 161.58583
    %v173 = vmul.f32 %v169, %v117
    %v174 = vmul.f32 %v170, %v118
    %v175 = vmul.f32 %v171, %v119
    %v176 = vmul.f32 %v172, %v120
    %v177 = vadd.f32 %v173, -155.69897
    %v178 = vadd.f32 %v174, -155.69897
    %v179 = vadd.f32 %v175, -155.69897
    %v180 = vadd.f32 %v176, -155.69897
    %v181 = vmul.f32 %v177, %v117
    %v182 = vmul.f32 %v178, %v118
    %v183 = vmul.f32 %v179, %v119
    %v184 = vmul.f32 %v180, %v120
    %v185 = vadd.f32 %v181, 66.801315
    %v186 = vadd.f32 %v182, 66.801315
    %v187 = vadd.f32 %v183, 66.801315
    %v188 = vadd.f32 %v184, 66.801315
    %v189 = vmul.f32 %v185, %v117
    %v190 = vmul.f32 %v186, %v118
    %v191 = vmul.f32 %v187, %v119
    %v192 = vmul.f32 %v188, %v120
    %v193 = vadd.f32 %v189, -13.280682
    %v194 = vadd.f32 %v190, -13.280682
    %v195 = vadd.f32 %v191, -13.280682
    %v196 = vadd.f32 %v192, -13.280682
    %v197 = vmul.f32 %v193, %v117
    %v198 = vmul.f32 %v194, %v118
    %v199 = vmul.f32 %v195, %v119
    %v200 = vmul.f32 %v196, %v120
    %v201 = vadd.f32 %v197, 1.0
    %v202 = vadd.f32 %v198, 1.0
    %v203 = vadd.f32 %v199, 1.0
    %v204 = vadd.f32 %v200, 1.0
    %v205 = vrcp.pop %v201
    %v206 = vmul.f32 %v161, %v205
    %v207 = vrcp.pop %v202
    %v208 = vmul.f32 %v162, %v207
    %v209 = vrcp.pop %v203
    %v210 = vmul.f32 %v163, %v209
    %v211 = vrcp.pop %v204
    %v212 = vmul.f32 %v164, %v211
    %v213 = vsub.f32 1.0, %v109
    %v214 = vsub.f32 1.0, %v110
    %v215 = vsub.f32 1.0, %v111
    %v216 = vsub.f32 1.0, %v112
    %v217 = vmin.f32 %v109, %v213
    %v218 = vmin.f32 %v110, %v214
    %v219 = vmin.f32 %v111, %v215
    %v220 = vmin.f32 %v112, %v216
    %v221 = vlog2.pop %v217
    %v222 = vmul.f32 %v221, 0.6931472
    %v223 = vlog2.pop %v218
    %v224 = vmul.f32 %v223, 0.6931472
    %v225 = vlog2.pop %v219
    %v226 = vmul.f32 %v225, 0.6931472
    %v227 = vlog2.pop %v220
    %v228 = vmul.f32 %v227, 0.6931472
    %v229 = vmul.f32 %v222, -2.0
    %v230 = vmul.f32 %v224, -2.0
    %v231 = vmul.f32 %v226, -2.0
    %v232 = vmul.f32 %v228, -2.0
    %v233 = vrsqrt.pop %v229
    %v234 = vmul.f32 %v229, %v233
    %vm235 = vcmp.eq.f32.partialorder %v229, inf
    %v236 = vsel %vm235, %v229, %v234
    %vm237 = vcmp.eq.f32.partialorder %v229, 0.0
    %v238 = vand.u32 %v229, 2147483648
    %v239 = vsel %vm237, %v238, %v236
    %v240 = vrsqrt.pop %v230
    %v241 = vmul.f32 %v230, %v240
    %vm242 = vcmp.eq.f32.partialorder %v230, inf
    %v243 = vsel %vm242, %v230, %v241
    %vm244 = vcmp.eq.f32.partialorder %v230, 0.0
    %v245 = vand.u32 %v230, 2147483648
    %v246 = vsel %vm244, %v245, %v243
    %v247 = vrsqrt.pop %v231
    %v248 = vmul.f32 %v231, %v247
    %vm249 = vcmp.eq.f32.partialorder %v231, inf
    %v250 = vsel %vm249, %v231, %v248
    %vm251 = vcmp.eq.f32.partialorder %v231, 0.0
    %v252 = vand.u32 %v231, 2147483648
    %v253 = vsel %vm251, %v252, %v250
    %v254 = vrsqrt.pop %v232
    %v255 = vmul.f32 %v232, %v254
    %vm256 = vcmp.eq.f32.partialorder %v232, inf
    %v257 = vsel %vm256, %v232, %v255
    %vm258 = vcmp.eq.f32.partialorder %v232, 0.0
    %v259 = vand.u32 %v232, 2147483648
    %v260 = vsel %vm258, %v259, %v257
    %v261 = vmul.f32 %v239, -0.007784894
    %v262 = vmul.f32 %v246, -0.007784894
    %v263 = vmul.f32 %v253, -0.007784894
    %v264 = vmul.f32 %v260, -0.007784894
    %v265 = vadd.f32 %v261, -0.32239646
    %v266 = vadd.f32 %v262, -0.32239646
    %v267 = vadd.f32 %v263, -0.32239646
    %v268 = vadd.f32 %v264, -0.32239646
    %v269 = vmul.f32 %v265, %v239
    %v270 = vmul.f32 %v266, %v246
    %v271 = vmul.f32 %v267, %v253
    %v272 = vmul.f32 %v268, %v260
    %v273 = vadd.f32 %v269, -2.4007583
    %v274 = vadd.f32 %v270, -2.4007583
    %v275 = vadd.f32 %v271, -2.4007583
    %v276 = vadd.f32 %v272, -2.4007583
    %v277 = vmul.f32 %v273, %v239
    %v278 = vmul.f32 %v274, %v246
    %v279 = vmul.f32 %v275, %v253
    %v280 = vmul.f32 %v276, %v260
    %v281 = vadd.f32 %v277, -2.5497324
    %v282 = vadd.f32 %v278, -2.5497324
    %v283 = vadd.f32 %v279, -2.5497324
    %v284 = vadd.f32 %v280, -2.5497324
    %v285 = vmul.f32 %v281, %v239
    %v286 = vmul.f32 %v282, %v246
    %v287 = vmul.f32 %v283, %v253
    %v288 = vmul.f32 %v284, %v260
    %v289 = vadd.f32 %v285, 4.3746643
    %v290 = vadd.f32 %v286, 4.3746643
    %v291 = vadd.f32 %v287, 4.3746643
    %v292 = vadd.f32 %v288, 4.3746643
    %v293 = vmul.f32 %v289, %v239
    %v294 = vmul.f32 %v290, %v246
    %v295 = vmul.f32 %v291, %v253
    %v296 = vmul.f32 %v292, %v260
    %v297 = vadd.f32 %v293, 2.938164
    %v298 = vadd.f32 %v294, 2.938164
    %v299 = vadd.f32 %v295, 2.938164
    %v300 = vadd.f32 %v296, 2.938164
    %v301 = vmul.f32 %v239, 0.007784696
    %v302 = vmul.f32 %v246, 0.007784696
    %v303 = vmul.f32 %v253, 0.007784696
    %v304 = vmul.f32 %v260, 0.007784696
    %v305 = vadd.f32 %v301, 0.32246712
    %v306 = vadd.f32 %v302, 0.32246712
    %v307 = vadd.f32 %v303, 0.32246712
    %v308 = vadd.f32 %v304, 0.32246712
    %v309 = vmul.f32 %v305, %v239
    %v310 = vmul.f32 %v306, %v246
    %v311 = vmul.f32 %v307, %v253
    %v312 = vmul.f32 %v308, %v260
    %v313 = vadd.f32 %v309, 2.4451342
    %v314 = vadd.f32 %v310, 2.4451342
    %v315 = vadd.f32 %v311, 2.4451342
    %v316 = vadd.f32 %v312, 2.4451342
    %v317 = vmul.f32 %v313, %v239
    %v318 = vmul.f32 %v314, %v246
    %v319 = vmul.f32 %v315, %v253
    %v320 = vmul.f32 %v316, %v260
    %v321 = vadd.f32 %v317, 3.7544086
    %v322 = vadd.f32 %v318, 3.7544086
    %v323 = vadd.f32 %v319, 3.7544086
    %v324 = vadd.f32 %v320, 3.7544086
    %v325 = vmul.f32 %v321, %v239
    %v326 = vmul.f32 %v322, %v246
    %v327 = vmul.f32 %v323, %v253
    %v328 = vmul.f32 %v324, %v260
    %v329 = vadd.f32 %v325, 1.0
    %v330 = vadd.f32 %v326, 1.0
    %v331 = vadd.f32 %v327, 1.0
    %v332 = vadd.f32 %v328, 1.0
    %vm333 = vcmp.lt.f32.partialorder %v109, 0.5
    %vm334 = vcmp.lt.f32.partialorder %v110, 0.5
    %vm335 = vcmp.lt.f32.partialorder %v111, 0.5
    %vm336 = vcmp.lt.f32.partialorder %v112, 0.5
    %v337 = vsel %vm333, -1.0, 1.0
    %v338 = vsel %vm334, -1.0, 1.0
    %v339 = vsel %vm335, -1.0, 1.0
    %v340 = vsel %vm336, -1.0, 1.0
    %v341 = vsub.f32 0.0, %v337
    %v342 = vsub.f32 0.0, %v338
    %v343 = vsub.f32 0.0, %v339
    %v344 = vsub.f32 0.0, %v340
    %v345 = vrcp.pop %v329
    %v346 = vmul.f32 %v297, %v345
    %v347 = vrcp.pop %v330
    %v348 = vmul.f32 %v298, %v347
    %v349 = vrcp.pop %v331
    %v350 = vmul.f32 %v299, %v349
    %v351 = vrcp.pop %v332
    %v352 = vmul.f32 %v300, %v351
    %v353 = vmul.f32 %v341, %v346
    %v354 = vmul.f32 %v342, %v348
    %v355 = vmul.f32 %v343, %v350
    %v356 = vmul.f32 %v344, %v352
    %vm357 = vcmp.lt.f32.partialorder %v217, 0.02425
    %vm358 = vcmp.lt.f32.partialorder %v218, 0.02425
    %vm359 = vcmp.lt.f32.partialorder %v219, 0.02425
    %vm360 = vcmp.lt.f32.partialorder %v220, 0.02425
    %v361 = vsel %vm357, %v353, %v206
    %v362 = vsel %vm358, %v354, %v208
    %v363 = vsel %vm359, %v355, %v210
    %v364 = vsel %vm360, %v356, %v212
    %v365 = vld [vmem:[#allocation7] sm:$0xff]
    %v366 = vld [vmem:[#allocation7 + $0x8] sm:$0xff]
    %v367 = vld [vmem:[#allocation7 + $0x10] sm:$0xff]
    %v368 = vld [vmem:[#allocation7 + $0x18] sm:$0xff]
    %v369 = vstv %s42
    %v370 = vmul.f32 %v361, %v369
    %v371 = vmul.f32 %v362, %v369
    %v372 = vmul.f32 %v363, %v369
    %v373 = vmul.f32 %v364, %v369
    %v374 = vadd.f32 %v365, %v370
    %v375 = vadd.f32 %v366, %v371
    %v376 = vadd.f32 %v367, %v372
    %v377 = vadd.f32 %v368, %v373
    %v378 = vstv %s41
    %v379 = vadd.f32 %v374, %v378
    %v380 = vadd.f32 %v375, %v378
    %v381 = vadd.f32 %v376, %v378
    %v382 = vadd.f32 %v377, %v378
    %383 = vst [vmem:[#allocation8] sm:$0xff] %v379
    %384 = vst [vmem:[#allocation8 + $0x8] sm:$0xff] %v380
    %385 = vst [vmem:[#allocation8 + $0x10] sm:$0xff] %v381
    %386 = vst [vmem:[#allocation8 + $0x18] sm:$0xff] %v382
    // Predicated region
    $region22: #{tpu_custom_call.1} parent=1 // pred_check
      _
    $region23: #{tpu_custom_call.1} parent=1 // pred_check_branch
      %388 = sbr.rel (0) target = $region25
    $region24: #{tpu_custom_call.1} parent=1 // pred_region
      %s390 = ssub.s32 512, 512
      %391 = vsyncadd [#allocation5], %s390
      %s393 = sshll.u32 [#allocation8], 4
      %s394 = int_to_ptr.vmem [resolvable:$true] %s393
      %396 = dma.vmem_to_hbm [thread:$0]  %s394, 512, %s3, [#allocation5]
    $region25: #{tpu_custom_call.1} parent=1 // pred_fallthru
      _
    // Predicated region
    $region26: #{tpu_custom_call.1} parent=1 // pred_check
      _
    $region27: #{tpu_custom_call.1} parent=1 // pred_check_branch
      %398 = sbr.rel (0) target = $region29
    $region28: #{tpu_custom_call.1} parent=1 // pred_region
      %399 = dma.done [#allocation5], 512
    $region29: #{tpu_custom_call.1} parent=1 // pred_fallthru
      _
    %400 = vsyncpa [#allocation4], 1
    %401 = vsyncpa [#allocation5], 1
    %402 = vsyncpa [#allocation6], 1

</llo_original>
